<compile_context>
chip_gen: v7x
topology: tpu7x:2x2x1
jax: 0.10.0
libtpu: 0.0.40
codegen_flags: <defaults>
</compile_context>

<pallas_src>
import functools

import jax
import jax.numpy as jnp
from jax.experimental import pallas as pl
from jax.experimental.pallas import tpu as pltpu

# ---------------------------------------------------------------------------
# Small dims consistent with PredictionModel (scaled down for a tiny example)
# ---------------------------------------------------------------------------
BATCH = 2
IMG_C, IMG_H, IMG_W = 3, 16, 16
N_USERS = 16
USER_DIM = 32          # user_embedding_dim
PIC_DIM = 128          # picture_embedding_dim
LIN_DIM = 64           # linear_embedding_dim
OUT_DIM = 5            # output_pred_dim
OUT_PAD = 128          # lane-dense padded output width
SUBLANE = 16           # bf16 sublane packing multiple (batch-row granularity)


def _round_up(x, m):
    return ((x + m - 1) // m) * m


def _tpu_kind():
    try:
        d = jax.devices()[0]
        if d.platform != "tpu":
            return ""
        return (d.device_kind or "").lower()
    except Exception:
        return ""


def _pick_tile_b(batch, kind):
    """Adaptive batch tile: minimal padding at small B, MXU-filling tiles and
    >=2 grid steps (for v7x's 2nd TensorCore) at large B."""
    b16 = _round_up(max(batch, 1), SUBLANE)
    newer = ("v6" in kind) or ("v7" in kind)
    cap = 256 if newer else 128          # v6e/v7x MXU is 256x256; v5e is 128x128
    if b16 <= SUBLANE:
        return SUBLANE                   # too small to split; one tiny step
    if b16 <= cap:
        if newer and b16 >= 2 * SUBLANE:
            # split into >=2 grid steps so both v7x TCs are used
            return _round_up((b16 + 1) // 2, SUBLANE)
        return b16
    return cap                           # large batch: grid has >=2 steps anyway


def prediction_kernel(ids_ref, img_ref, utab_ref,
                      ws_ref, bs_ref,
                      w1_ref, b1_ref,
                      w2_ref, b2_ref,
                      w3u_ref, w3i_ref, b3_ref,
                      w4_ref, b4_ref,
                      out_ref, *, bf16_epilogue=False):
    def bias_relu(acc_f32, b_ref):
        if bf16_epilogue:
            # v6e/v7x: packed-bf16 VALU add + relu (half the VPU ops / vregs)
            x = acc_f32.astype(jnp.bfloat16) + b_ref[...].astype(jnp.bfloat16)
            return jnp.maximum(x, 0)
        # v5e / unknown: f32 VPU math, single cast to bf16 for the next matmul
        x = acc_f32 + b_ref[...]
        return jnp.maximum(x, 0.0).astype(jnp.bfloat16)

    # --- user embedding gather, fused as one-hot @ table on the MXU ---------
    # TODO(synk): one-hot matmul is only sensible while N_USERS is tiny; use a
    # scalar-prefetched DMA gather for production-size embedding tables.
    ids = ids_ref[...]                                            # (TB, 1) int32
    iota = jax.lax.broadcasted_iota(jnp.int32, (ids.shape[0], N_USERS), 1)
    onehot = (iota == ids).astype(jnp.bfloat16)                   # (TB, N_USERS)
    u = jnp.dot(onehot, utab_ref[...],
                preferred_element_type=jnp.float32).astype(jnp.bfloat16)

    # --- ResnetEmbeddings (frozen, no_grad) stand-in: pooled projection -----
    # TODO(synk): the real module uses a pretrained torchvision ResNet18
    # backbone; a deterministic pooled-projection stand-in producing the same
    # (B, picture_embedding_dim) embedding is used instead.  The average pool
    # is folded into the matmul (ws_ref = per-channel weight repeated over H*W
    # rows, pre-scaled by 1/(H*W)) — valid only at small chw, see header TODO.
    feat = bias_relu(jnp.dot(img_ref[...], ws_ref[...],
                             preferred_element_type=jnp.float32), bs_ref)

    # --- image_embedding = relu(linear_1(image_embedding.view(B, -1))) ------
    h1 = bias_relu(jnp.dot(feat, w1_ref[...],
                           preferred_element_type=jnp.float32), b1_ref)

    # --- image_embedding = relu(linear_2(image_embedding)) ------------------
    h2 = bias_relu(jnp.dot(h1, w2_ref[...],
                           preferred_element_type=jnp.float32), b2_ref)

    # --- cat([user_emb, image_emb], dim=1) -> linear_3 -> relu ---------------
    #     (concat + matmul expressed as a split matmul: identical math)
    acc3 = (jnp.dot(u, w3u_ref[...], preferred_element_type=jnp.float32)
            + jnp.dot(h2, w3i_ref[...], preferred_element_type=jnp.float32))
    h3 = bias_relu(acc3, b3_ref)                                  # (TB, LIN_DIM)

    # --- output = sigmoid(linear_4(output)), padded to 128 lanes -------------
    logits = jnp.dot(h3, w4_ref[...],
                     preferred_element_type=jnp.float32) + b4_ref[...]
    out_ref[...] = jax.nn.sigmoid(logits)                         # (TB, OUT_PAD) f32


@jax.jit
def prediction_model_forward(user_id, image, params):
    B = user_id.shape[0]
    chw = image.shape[1] * image.shape[2] * image.shape[3]

    kind = _tpu_kind()                               # trace-time constants
    tile_b = _pick_tile_b(B, kind)
    bf16_epilogue = ("v6" in kind) or ("v7" in kind)  # v5e/unknown -> f32 path

    # Glue: NCHW -> (B, C*H*W) flatten; pool is folded into the stem weights.
    img = image.reshape(B, chw).astype(jnp.bfloat16)

    # Pad batch up to a multiple of the (adaptive) batch tile.
    b_pad = _round_up(B, tile_b)
    if b_pad != B:
        img = jnp.pad(img, ((0, b_pad - B), (0, 0)))
        user_id = jnp.pad(user_id, (0, b_pad - B))
    ids = user_id.astype(jnp.int32).reshape(b_pad, 1)

    inputs = (ids, img, params["user_embeddings"],
              params["w_stem"], params["b_stem"],
              params["w1"], params["b1"],
              params["w2"], params["b2"],
              params["w3_u"], params["w3_i"], params["b3"],
              params["w4"], params["b4"])

    grid = (b_pad // tile_b,)

    def resident(arr):
        # Weights/tables: constant index map -> never re-DMA'd across grid
        # steps -> single buffer (default double buffer is pure VMEM waste).
        index_map = lambda i: (0,) * arr.ndim
        try:
            return pl.BlockSpec(arr.shape, index_map,
                                pipeline_mode=pl.Buffered(buffer_count=1))
        except Exception:   # older jax without pipeline_mode / Buffered(1)
            return pl.BlockSpec(arr.shape, index_map)

    in_specs = [
        pl.BlockSpec((tile_b, 1), lambda i: (i, 0)),      # ids (batch-tiled)
        pl.BlockSpec((tile_b, chw), lambda i: (i, 0)),    # image (batch-tiled)
    ] + [resident(a) for a in inputs[2:]]                 # table + weights/biases

    out_specs = pl.BlockSpec((tile_b, OUT_PAD), lambda i: (i, 0))

    # Explicit VMEM budget: streamed tiles are double-buffered, weights are
    # single-buffered; keep >= scoped defaults so it never shrinks the budget.
    weight_bytes = sum(int(a.size) * a.dtype.itemsize for a in inputs[2:])
    stream_bytes = 2 * (tile_b * chw * 2 + tile_b * 4 + tile_b * OUT_PAD * 4)
    vmem_limit = int(min(max(2 * (weight_bytes + stream_bytes) + (4 << 20),
                             32 << 20), 96 << 20))

    flops = 2 * b_pad * (N_USERS * USER_DIM + chw * PIC_DIM + 2 * PIC_DIM * PIC_DIM
                         + USER_DIM * LIN_DIM + PIC_DIM * LIN_DIM + LIN_DIM * OUT_PAD)
    bytes_accessed = sum(int(a.size) * a.dtype.itemsize for a in inputs) \
        + b_pad * OUT_PAD * 4
    cost = pl.CostEstimate(flops=flops,
                           transcendentals=b_pad * OUT_PAD,
                           bytes_accessed=bytes_accessed)

    out = pl.pallas_call(
        functools.partial(prediction_kernel, bf16_epilogue=bf16_epilogue),
        out_shape=jax.ShapeDtypeStruct((b_pad, OUT_PAD), jnp.float32),
        grid=grid,
        in_specs=in_specs,
        out_specs=out_specs,
        compiler_params=pltpu.CompilerParams(
            dimension_semantics=("parallel",),            # shards batch over TCs
            vmem_limit_bytes=vmem_limit),
        cost_estimate=cost,
    )(*inputs)

    return out[:B, :OUT_DIM]


def init_params(key):
    """Deterministic synthetic parameters (PyTorch Linear-style uniform init),
    pre-packed for the kernel (bf16 matmul weights, f32 biases, pool folded in,
    lane-padded final layer)."""
    ks = jax.random.split(key, 6)

    def lin(k, fan_in, fan_out):
        bound = 1.0 / float(fan_in) ** 0.5
        kw, kb = jax.random.split(k)
        w = jax.random.uniform(kw, (fan_in, fan_out), jnp.float32, -bound, bound)
        b = jax.random.uniform(kb, (1, fan_out), jnp.float32, -bound, bound)
        return w, b

    hw = IMG_H * IMG_W
    params = {}
    params["user_embeddings"] = jax.random.normal(
        ks[0], (N_USERS, USER_DIM), jnp.float32).astype(jnp.bfloat16)   # nn.Embedding ~ N(0,1)

    # ResNet stand-in projection; fold the global-average-pool into the weight:
    # mean over H*W then (B,C)@W  ==  (B,C*H*W) @ repeat(W, H*W)/(H*W).
    # (Row order is channel-major -> matches the NCHW flatten in the wrapper.)
    # TODO(synk): un-fold / K-tile this at real ResNet image sizes (see header).
    w_stem, b_stem = lin(ks[1], IMG_C, PIC_DIM)
    params["w_stem"] = (jnp.repeat(w_stem, hw, axis=0) / hw).astype(jnp.bfloat16)
    params["b_stem"] = b_stem                                            # f32

    w1, params["b1"] = lin(ks[2], PIC_DIM, PIC_DIM)                      # linear_1
    params["w1"] = w1.astype(jnp.bfloat16)
    w2, params["b2"] = lin(ks[3], PIC_DIM, PIC_DIM)                      # linear_2
    params["w2"] = w2.astype(jnp.bfloat16)

    w3, params["b3"] = lin(ks[4], USER_DIM + PIC_DIM, LIN_DIM)           # linear_3 (split)
    params["w3_u"] = w3[:USER_DIM].astype(jnp.bfloat16)
    params["w3_i"] = w3[USER_DIM:].astype(jnp.bfloat16)

    w4, b4 = lin(ks[5], LIN_DIM, OUT_DIM)                                # linear_4, lane-padded
    params["w4"] = jnp.pad(w4, ((0, 0), (0, OUT_PAD - OUT_DIM))).astype(jnp.bfloat16)
    params["b4"] = jnp.pad(b4, ((0, 0), (0, OUT_PAD - OUT_DIM)))         # f32
    return params


if __name__ == "__main__":
    key = jax.random.PRNGKey(0)
    k_params, k_img, k_uid = jax.random.split(key, 3)

    params = init_params(k_params)
    image = jax.random.normal(k_img, (BATCH, IMG_C, IMG_H, IMG_W), jnp.float32)  # NCHW
    user_id = jax.random.randint(k_uid, (BATCH,), 0, N_USERS, dtype=jnp.int32)

    out = prediction_model_forward(user_id, image, params)
    jax.block_until_ready(out)
    assert out.shape == (BATCH, OUT_DIM)
    assert bool(jnp.all((out >= 0.0) & (out <= 1.0)))   # sigmoid output range
    print("KERNEL_OK")
</pallas_src>

<mosaic_0001>
module attributes {stable_mosaic.version = 11 : i64} {
  func.func @prediction_kernel(%arg0: i32, %arg1: memref<16x1xi32, #tpu.memory_space<vmem>>, %arg2: memref<16x768xbf16, #tpu.memory_space<vmem>>, %arg3: memref<16x32xbf16, #tpu.memory_space<vmem>>, %arg4: memref<768x128xbf16, #tpu.memory_space<vmem>>, %arg5: memref<1x128xf32, #tpu.memory_space<vmem>>, %arg6: memref<128x128xbf16, #tpu.memory_space<vmem>>, %arg7: memref<1x128xf32, #tpu.memory_space<vmem>>, %arg8: memref<128x128xbf16, #tpu.memory_space<vmem>>, %arg9: memref<1x128xf32, #tpu.memory_space<vmem>>, %arg10: memref<32x64xbf16, #tpu.memory_space<vmem>>, %arg11: memref<128x64xbf16, #tpu.memory_space<vmem>>, %arg12: memref<1x64xf32, #tpu.memory_space<vmem>>, %arg13: memref<64x128xbf16, #tpu.memory_space<vmem>>, %arg14: memref<1x128xf32, #tpu.memory_space<vmem>>, %arg15: memref<16x128xf32, #tpu.memory_space<vmem>>) attributes {dimension_semantics = [#tpu.dimension_semantics<parallel>], iteration_bounds = array<i64: 1>, scalar_prefetch = 0 : i64, scratch_operands = 0 : i64, tpu.core_type = #tpu.core_type<tc>, window_params = [{transform_indices = @transform_0, window_bounds = array<i64: 16, 1>}, {transform_indices = @transform_1, window_bounds = array<i64: 16, 768>}, {pipeline_mode = #tpu.pipeline_mode<synchronous>, transform_indices = @transform_2, window_bounds = array<i64: 16, 32>}, {pipeline_mode = #tpu.pipeline_mode<synchronous>, transform_indices = @transform_3, window_bounds = array<i64: 768, 128>}, {pipeline_mode = #tpu.pipeline_mode<synchronous>, transform_indices = @transform_4, window_bounds = array<i64: 1, 128>}, {pipeline_mode = #tpu.pipeline_mode<synchronous>, transform_indices = @transform_5, window_bounds = array<i64: 128, 128>}, {pipeline_mode = #tpu.pipeline_mode<synchronous>, transform_indices = @transform_6, window_bounds = array<i64: 1, 128>}, {pipeline_mode = #tpu.pipeline_mode<synchronous>, transform_indices = @transform_7, window_bounds = array<i64: 128, 128>}, {pipeline_mode = #tpu.pipeline_mode<synchronous>, transform_indices = @transform_8, window_bounds = array<i64: 1, 128>}, {pipeline_mode = #tpu.pipeline_mode<synchronous>, transform_indices = @transform_9, window_bounds = array<i64: 32, 64>}, {pipeline_mode = #tpu.pipeline_mode<synchronous>, transform_indices = @transform_10, window_bounds = array<i64: 128, 64>}, {pipeline_mode = #tpu.pipeline_mode<synchronous>, transform_indices = @transform_11, window_bounds = array<i64: 1, 64>}, {pipeline_mode = #tpu.pipeline_mode<synchronous>, transform_indices = @transform_12, window_bounds = array<i64: 64, 128>}, {pipeline_mode = #tpu.pipeline_mode<synchronous>, transform_indices = @transform_13, window_bounds = array<i64: 1, 128>}, {transform_indices = @transform_14, window_bounds = array<i64: 16, 128>}]} {
    %c0 = arith.constant 0 : index
    %c0_0 = arith.constant 0 : index
    %0 = vector.load %arg1[%c0, %c0_0] : memref<16x1xi32, #tpu.memory_space<vmem>>, vector<16x1xi32>
    %1 = tpu.iota {dimensions = array<i32: 1>} : vector<16x16xi32>
    %2 = vector.broadcast %0 : vector<16x1xi32> to vector<16x16xi32>
    %3 = arith.cmpi eq, %1, %2 : vector<16x16xi32>
    %4 = arith.extui %3 : vector<16x16xi1> to vector<16x16xi32>
    %5 = arith.sitofp %4 : vector<16x16xi32> to vector<16x16xf32>
    %6 = arith.truncf %5 : vector<16x16xf32> to vector<16x16xbf16>
    %c0_1 = arith.constant 0 : index
    %c0_2 = arith.constant 0 : index
    %7 = vector.load %arg3[%c0_1, %c0_2] : memref<16x32xbf16, #tpu.memory_space<vmem>>, vector<16x32xbf16>
    %cst = arith.constant dense<0.000000e+00> : vector<16x32xf32>
    %8 = tpu.matmul %6, %7, %cst {dimension_numbers = #tpu.dot_dimension_numbers<[1], [0], [0], [1], [0, 0, 1, 1], [], []>} : vector<16x16xbf16>, vector<16x32xbf16>, vector<16x32xf32> -> vector<16x32xf32>
    %9 = arith.truncf %8 : vector<16x32xf32> to vector<16x32xbf16>
    %c0_3 = arith.constant 0 : index
    %c0_4 = arith.constant 0 : index
    %10 = vector.load %arg2[%c0_3, %c0_4] : memref<16x768xbf16, #tpu.memory_space<vmem>>, vector<16x768xbf16>
    %c0_5 = arith.constant 0 : index
    %c0_6 = arith.constant 0 : index
    %11 = vector.load %arg4[%c0_5, %c0_6] : memref<768x128xbf16, #tpu.memory_space<vmem>>, vector<768x128xbf16>
    %cst_7 = arith.constant dense<0.000000e+00> : vector<16x128xf32>
    %12 = tpu.matmul %10, %11, %cst_7 {dimension_numbers = #tpu.dot_dimension_numbers<[1], [0], [0], [1], [0, 0, 1, 1], [], []>} : vector<16x768xbf16>, vector<768x128xbf16>, vector<16x128xf32> -> vector<16x128xf32>
    %c0_8 = arith.constant 0 : index
    %c0_9 = arith.constant 0 : index
    %13 = vector.load %arg5[%c0_8, %c0_9] : memref<1x128xf32, #tpu.memory_space<vmem>>, vector<1x128xf32>
    %14 = vector.broadcast %13 : vector<1x128xf32> to vector<16x128xf32>
    %15 = arith.addf %12, %14 : vector<16x128xf32>
    %cst_10 = arith.constant 0.000000e+00 : f32
    %16 = vector.broadcast %cst_10 : f32 to vector<16x128xf32>
    %17 = arith.maximumf %15, %16 : vector<16x128xf32>
    %18 = arith.truncf %17 : vector<16x128xf32> to vector<16x128xbf16>
    %c0_11 = arith.constant 0 : index
    %c0_12 = arith.constant 0 : index
    %19 = vector.load %arg6[%c0_11, %c0_12] : memref<128x128xbf16, #tpu.memory_space<vmem>>, vector<128x128xbf16>
    %cst_13 = arith.constant dense<0.000000e+00> : vector<16x128xf32>
    %20 = tpu.matmul %18, %19, %cst_13 {dimension_numbers = #tpu.dot_dimension_numbers<[1], [0], [0], [1], [0, 0, 1, 1], [], []>} : vector<16x128xbf16>, vector<128x128xbf16>, vector<16x128xf32> -> vector<16x128xf32>
    %c0_14 = arith.constant 0 : index
    %c0_15 = arith.constant 0 : index
    %21 = vector.load %arg7[%c0_14, %c0_15] : memref<1x128xf32, #tpu.memory_space<vmem>>, vector<1x128xf32>
    %22 = vector.broadcast %21 : vector<1x128xf32> to vector<16x128xf32>
    %23 = arith.addf %20, %22 : vector<16x128xf32>
    %cst_16 = arith.constant 0.000000e+00 : f32
    %24 = vector.broadcast %cst_16 : f32 to vector<16x128xf32>
    %25 = arith.maximumf %23, %24 : vector<16x128xf32>
    %26 = arith.truncf %25 : vector<16x128xf32> to vector<16x128xbf16>
    %c0_17 = arith.constant 0 : index
    %c0_18 = arith.constant 0 : index
    %27 = vector.load %arg8[%c0_17, %c0_18] : memref<128x128xbf16, #tpu.memory_space<vmem>>, vector<128x128xbf16>
    %cst_19 = arith.constant dense<0.000000e+00> : vector<16x128xf32>
    %28 = tpu.matmul %26, %27, %cst_19 {dimension_numbers = #tpu.dot_dimension_numbers<[1], [0], [0], [1], [0, 0, 1, 1], [], []>} : vector<16x128xbf16>, vector<128x128xbf16>, vector<16x128xf32> -> vector<16x128xf32>
    %c0_20 = arith.constant 0 : index
    %c0_21 = arith.constant 0 : index
    %29 = vector.load %arg9[%c0_20, %c0_21] : memref<1x128xf32, #tpu.memory_space<vmem>>, vector<1x128xf32>
    %30 = vector.broadcast %29 : vector<1x128xf32> to vector<16x128xf32>
    %31 = arith.addf %28, %30 : vector<16x128xf32>
    %cst_22 = arith.constant 0.000000e+00 : f32
    %32 = vector.broadcast %cst_22 : f32 to vector<16x128xf32>
    %33 = arith.maximumf %31, %32 : vector<16x128xf32>
    %34 = arith.truncf %33 : vector<16x128xf32> to vector<16x128xbf16>
    %c0_23 = arith.constant 0 : index
    %c0_24 = arith.constant 0 : index
    %35 = vector.load %arg10[%c0_23, %c0_24] : memref<32x64xbf16, #tpu.memory_space<vmem>>, vector<32x64xbf16>
    %cst_25 = arith.constant dense<0.000000e+00> : vector<16x64xf32>
    %36 = tpu.matmul %9, %35, %cst_25 {dimension_numbers = #tpu.dot_dimension_numbers<[1], [0], [0], [1], [0, 0, 1, 1], [], []>} : vector<16x32xbf16>, vector<32x64xbf16>, vector<16x64xf32> -> vector<16x64xf32>
    %c0_26 = arith.constant 0 : index
    %c0_27 = arith.constant 0 : index
    %37 = vector.load %arg11[%c0_26, %c0_27] : memref<128x64xbf16, #tpu.memory_space<vmem>>, vector<128x64xbf16>
    %cst_28 = arith.constant dense<0.000000e+00> : vector<16x64xf32>
    %38 = tpu.matmul %34, %37, %cst_28 {dimension_numbers = #tpu.dot_dimension_numbers<[1], [0], [0], [1], [0, 0, 1, 1], [], []>} : vector<16x128xbf16>, vector<128x64xbf16>, vector<16x64xf32> -> vector<16x64xf32>
    %39 = arith.addf %36, %38 : vector<16x64xf32>
    %c0_29 = arith.constant 0 : index
    %c0_30 = arith.constant 0 : index
    %40 = vector.load %arg12[%c0_29, %c0_30] : memref<1x64xf32, #tpu.memory_space<vmem>>, vector<1x64xf32>
    %41 = vector.broadcast %40 : vector<1x64xf32> to vector<16x64xf32>
    %42 = arith.addf %39, %41 : vector<16x64xf32>
    %cst_31 = arith.constant 0.000000e+00 : f32
    %43 = vector.broadcast %cst_31 : f32 to vector<16x64xf32>
    %44 = arith.maximumf %42, %43 : vector<16x64xf32>
    %45 = arith.truncf %44 : vector<16x64xf32> to vector<16x64xbf16>
    %c0_32 = arith.constant 0 : index
    %c0_33 = arith.constant 0 : index
    %46 = vector.load %arg13[%c0_32, %c0_33] : memref<64x128xbf16, #tpu.memory_space<vmem>>, vector<64x128xbf16>
    %cst_34 = arith.constant dense<0.000000e+00> : vector<16x128xf32>
    %47 = tpu.matmul %45, %46, %cst_34 {dimension_numbers = #tpu.dot_dimension_numbers<[1], [0], [0], [1], [0, 0, 1, 1], [], []>} : vector<16x64xbf16>, vector<64x128xbf16>, vector<16x128xf32> -> vector<16x128xf32>
    %c0_35 = arith.constant 0 : index
    %c0_36 = arith.constant 0 : index
    %48 = vector.load %arg14[%c0_35, %c0_36] : memref<1x128xf32, #tpu.memory_space<vmem>>, vector<1x128xf32>
    %49 = vector.broadcast %48 : vector<1x128xf32> to vector<16x128xf32>
    %50 = arith.addf %47, %49 : vector<16x128xf32>
    %51 = arith.negf %50 : vector<16x128xf32>
    %52 = math.exp %51 : vector<16x128xf32>
    %cst_37 = arith.constant 1.000000e+00 : f32
    %53 = vector.broadcast %cst_37 : f32 to vector<16x128xf32>
    %54 = arith.addf %53, %52 : vector<16x128xf32>
    %55 = arith.divf %53, %54 : vector<16x128xf32>
    %c0_38 = arith.constant 0 : index
    %c0_39 = arith.constant 0 : index
    %56 = vector.load %arg15[%c0_38, %c0_39] : memref<16x128xf32, #tpu.memory_space<vmem>>, vector<16x128xf32>
    tpu.vector_store %arg15[%c0_38, %c0_39], %55 {strides = array<i32>} : memref<16x128xf32, #tpu.memory_space<vmem>>, vector<16x128xf32>,
    return
  }
  func.func @transform_0(%arg0: i32) -> (i32, i32) {
    %c0_i32 = arith.constant 0 : i32
    %c0_i32_0 = arith.constant 0 : i32
    return %arg0, %c0_i32 : i32, i32
  }
  func.func @transform_1(%arg0: i32) -> (i32, i32) {
    %c0_i32 = arith.constant 0 : i32
    %c0_i32_0 = arith.constant 0 : i32
    return %arg0, %c0_i32 : i32, i32
  }
  func.func @transform_2(%arg0: i32) -> (i32, i32) {
    %c0_i32 = arith.constant 0 : i32
    %c0_i32_0 = arith.constant 0 : i32
    %c0_i32_1 = arith.constant 0 : i32
    return %c0_i32, %c0_i32_0 : i32, i32
  }
  func.func @transform_3(%arg0: i32) -> (i32, i32) {
    %c0_i32 = arith.constant 0 : i32
    %c0_i32_0 = arith.constant 0 : i32
    %c0_i32_1 = arith.constant 0 : i32
    return %c0_i32, %c0_i32_0 : i32, i32
  }
  func.func @transform_4(%arg0: i32) -> (i32, i32) {
    %c0_i32 = arith.constant 0 : i32
    %c0_i32_0 = arith.constant 0 : i32
    %c0_i32_1 = arith.constant 0 : i32
    return %c0_i32, %c0_i32_0 : i32, i32
  }
  func.func @transform_5(%arg0: i32) -> (i32, i32) {
    %c0_i32 = arith.constant 0 : i32
    %c0_i32_0 = arith.constant 0 : i32
    %c0_i32_1 = arith.constant 0 : i32
    return %c0_i32, %c0_i32_0 : i32, i32
  }
  func.func @transform_6(%arg0: i32) -> (i32, i32) {
    %c0_i32 = arith.constant 0 : i32
    %c0_i32_0 = arith.constant 0 : i32
    %c0_i32_1 = arith.constant 0 : i32
    return %c0_i32, %c0_i32_0 : i32, i32
  }
  func.func @transform_7(%arg0: i32) -> (i32, i32) {
    %c0_i32 = arith.constant 0 : i32
    %c0_i32_0 = arith.constant 0 : i32
    %c0_i32_1 = arith.constant 0 : i32
    return %c0_i32, %c0_i32_0 : i32, i32
  }
  func.func @transform_8(%arg0: i32) -> (i32, i32) {
    %c0_i32 = arith.constant 0 : i32
    %c0_i32_0 = arith.constant 0 : i32
    %c0_i32_1 = arith.constant 0 : i32
    return %c0_i32, %c0_i32_0 : i32, i32
  }
  func.func @transform_9(%arg0: i32) -> (i32, i32) {
    %c0_i32 = arith.constant 0 : i32
    %c0_i32_0 = arith.constant 0 : i32
    %c0_i32_1 = arith.constant 0 : i32
    return %c0_i32, %c0_i32_0 : i32, i32
  }
  func.func @transform_10(%arg0: i32) -> (i32, i32) {
    %c0_i32 = arith.constant 0 : i32
    %c0_i32_0 = arith.constant 0 : i32
    %c0_i32_1 = arith.constant 0 : i32
    return %c0_i32, %c0_i32_0 : i32, i32
  }
  func.func @transform_11(%arg0: i32) -> (i32, i32) {
    %c0_i32 = arith.constant 0 : i32
    %c0_i32_0 = arith.constant 0 : i32
    %c0_i32_1 = arith.constant 0 : i32
    return %c0_i32, %c0_i32_0 : i32, i32
  }
  func.func @transform_12(%arg0: i32) -> (i32, i32) {
    %c0_i32 = arith.constant 0 : i32
    %c0_i32_0 = arith.constant 0 : i32
    %c0_i32_1 = arith.constant 0 : i32
    return %c0_i32, %c0_i32_0 : i32, i32
  }
  func.func @transform_13(%arg0: i32) -> (i32, i32) {
    %c0_i32 = arith.constant 0 : i32
    %c0_i32_0 = arith.constant 0 : i32
    %c0_i32_1 = arith.constant 0 : i32
    return %c0_i32, %c0_i32_0 : i32, i32
  }
  func.func @transform_14(%arg0: i32) -> (i32, i32) {
    %c0_i32 = arith.constant 0 : i32
    %c0_i32_0 = arith.constant 0 : i32
    return %arg0, %c0_i32 : i32, i32
  }
}

</mosaic_0001>

<llo_original>
// kernel: prediction_model_forward.1
$region0: #{prediction_model_forward.1}
  #allocation0 [shape = 'u32[]', space=smem, size = 0x4, offset = 0x4, fixed_abs, tag = 'smem constant byte address 0x4 - core index']
  #allocation1 [shape = 'u32[144,128]{1,0:T(1,128)}', space=vmem, size = 0x12000, scoped, tag = 'internal scratch']
  %s0 = inlined_call_operand.vmem [shape: s32[16,1], index: 0, kind: input, shape index: {}]
  %s1 = inlined_call_operand.vmem [shape: bf16[16,768], index: 1, kind: input, shape index: {}]
  %s2 = inlined_call_operand.hbm [shape: bf16[16,32], index: 2, kind: input, shape index: {}]
  %s3 = inlined_call_operand.vmem [shape: bf16[768,128], index: 3, kind: input, shape index: {}]
  %s4 = inlined_call_operand.vmem [shape: f32[1,128], index: 4, kind: input, shape index: {}]
  %s5 = inlined_call_operand.hbm [shape: bf16[128,128], index: 5, kind: input, shape index: {}]
  %s6 = inlined_call_operand.vmem [shape: f32[1,128], index: 6, kind: input, shape index: {}]
  %s7 = inlined_call_operand.hbm [shape: bf16[128,128], index: 7, kind: input, shape index: {}]
  %s8 = inlined_call_operand.hbm [shape: f32[1,128], index: 8, kind: input, shape index: {}]
  %s9 = inlined_call_operand.hbm [shape: bf16[32,64], index: 9, kind: input, shape index: {}]
  %s10 = inlined_call_operand.vmem [shape: bf16[128,64], index: 10, kind: input, shape index: {}]
  %s11 = inlined_call_operand.hbm [shape: f32[1,64], index: 11, kind: input, shape index: {}]
  %s12 = inlined_call_operand.vmem [shape: bf16[64,128], index: 12, kind: input, shape index: {}]
  %s13 = inlined_call_operand.hbm [shape: f32[1,128], index: 13, kind: input, shape index: {}]
  %s14 = inlined_call_operand.vmem [shape: f32[16,128], index: 14, kind: output, shape index: {}]
  %s15 = sld [smem:[#allocation0]]
  $region94: #{prediction_model_forward.1} parent=0
    _
  %s17 = ssub.s32 1, %s15
  %s18 = scalar_select 0, %s17, %s15
  $region1: #{prediction_model_forward.1} parent=0
    #allocation2 [shape = 'u8[4096]{0}', space=vmem, size = 0x1000, scoped, tag = 'input window, operand 2, single buffered']
    #allocation3 [shape = 's32[1]{0}', space=sflag, size = 0x4, scoped, tag = 'scoped memory for prediction_model_forward.1']
    #allocation4 [shape = 'u8[32768]{0}', space=vmem, size = 0x8000, scoped, tag = 'input window, operand 5, single buffered']
    #allocation5 [shape = 's32[1]{0}', space=sflag, size = 0x4, scoped, tag = 'scoped memory for prediction_model_forward.1']
    #allocation6 [shape = 'u8[32768]{0}', space=vmem, size = 0x8000, scoped, tag = 'input window, operand 7, single buffered']
    #allocation7 [shape = 'u8[512]{0}', space=vmem, size = 0x400, scoped, tag = 'input window, operand 8, single buffered']
    #allocation8 [shape = 's32[1]{0}', space=sflag, size = 0x4, scoped, tag = 'scoped memory for prediction_model_forward.1']
    #allocation9 [shape = 'u8[8192]{0}', space=vmem, size = 0x2000, scoped, tag = 'input window, operand 9, single buffered']
    #allocation10 [shape = 'u8[512]{0}', space=vmem, size = 0x400, scoped, tag = 'input window, operand 11, single buffered']
    #allocation11 [shape = 's32[1]{0}', space=sflag, size = 0x4, scoped, tag = 'scoped memory for prediction_model_forward.1']
    #allocation12 [shape = 'u8[512]{0}', space=vmem, size = 0x400, scoped, tag = 'input window, operand 13, single buffered']
    %19 = vsyncpa [#allocation3], 0
    %20 = vsyncpa [#allocation5], 0
    %21 = vsyncpa [#allocation8], 0
    %22 = vsyncpa [#allocation11], 0
    // Predicated region
    $region2: #{prediction_model_forward.1} parent=1 // pred_check
      _
    $region3: #{prediction_model_forward.1} parent=1 // pred_check_branch
      %24 = sbr.rel (0) target = $region5
    $region4: #{prediction_model_forward.1} parent=1 // pred_region
      _
    $region5: #{prediction_model_forward.1} parent=1 // pred_fallthru
      _
    // Predicated region
    $region6: #{prediction_model_forward.1} parent=1 // pred_check
      _
    $region7: #{prediction_model_forward.1} parent=1 // pred_check_branch
      %26 = sbr.rel (0) target = $region9
    $region8: #{prediction_model_forward.1} parent=1 // pred_region
      _
    $region9: #{prediction_model_forward.1} parent=1 // pred_fallthru
      _
    // Predicated region
    $region10: #{prediction_model_forward.1} parent=1 // pred_check
      _
    $region11: #{prediction_model_forward.1} parent=1 // pred_check_branch
      %28 = sbr.rel (0) target = $region13
    $region12: #{prediction_model_forward.1} parent=1 // pred_region
      %s30 = ssub.s32 128, 128
      %31 = vsyncadd [#allocation3], %s30
      %s32 = sshll.u32 [#allocation2], 4
      %s33 = int_to_ptr.vmem [resolvable:$true] %s32
      %38 = dma.hbm_to_vmem [thread:$0]  %s2, 128, %s33, [#allocation3], 64, 64, 4
    $region13: #{prediction_model_forward.1} parent=1 // pred_fallthru
      _
    // Predicated region
    $region14: #{prediction_model_forward.1} parent=1 // pred_check
      _
    $region15: #{prediction_model_forward.1} parent=1 // pred_check_branch
      %40 = sbr.rel (0) target = $region17
    $region16: #{prediction_model_forward.1} parent=1 // pred_region
      _
    $region17: #{prediction_model_forward.1} parent=1 // pred_fallthru
      _
    // Predicated region
    $region18: #{prediction_model_forward.1} parent=1 // pred_check
      _
    $region19: #{prediction_model_forward.1} parent=1 // pred_check_branch
      %42 = sbr.rel (0) target = $region21
    $region20: #{prediction_model_forward.1} parent=1 // pred_region
      _
    $region21: #{prediction_model_forward.1} parent=1 // pred_fallthru
      _
    // Predicated region
    $region22: #{prediction_model_forward.1} parent=1 // pred_check
      _
    $region23: #{prediction_model_forward.1} parent=1 // pred_check_branch
      %44 = sbr.rel (0) target = $region25
    $region24: #{prediction_model_forward.1} parent=1 // pred_region
      %s46 = ssub.s32 1024, 1024
      %47 = vsyncadd [#allocation5], %s46
      %s48 = sshll.u32 [#allocation4], 4
      %s49 = int_to_ptr.vmem [resolvable:$true] %s48
      %54 = dma.hbm_to_vmem [thread:$0]  %s5, 1024, %s49, [#allocation5], 64, 64, 4
    $region25: #{prediction_model_forward.1} parent=1 // pred_fallthru
      _
    // Predicated region
    $region26: #{prediction_model_forward.1} parent=1 // pred_check
      _
    $region27: #{prediction_model_forward.1} parent=1 // pred_check_branch
      %56 = sbr.rel (0) target = $region29
    $region28: #{prediction_model_forward.1} parent=1 // pred_region
      _
    $region29: #{prediction_model_forward.1} parent=1 // pred_fallthru
      _
    // Predicated region
    $region30: #{prediction_model_forward.1} parent=1 // pred_check
      _
    $region31: #{prediction_model_forward.1} parent=1 // pred_check_branch
      %58 = sbr.rel (0) target = $region33
    $region32: #{prediction_model_forward.1} parent=1 // pred_region
      %s60 = ssub.s32 1024, 1024
      %61 = vsyncadd [#allocation5], %s60
      %s62 = sshll.u32 [#allocation6], 4
      %s63 = int_to_ptr.vmem [resolvable:$true] %s62
      %68 = dma.hbm_to_vmem [thread:$0]  %s7, 1024, %s63, [#allocation5], 64, 64, 4
    $region33: #{prediction_model_forward.1} parent=1 // pred_fallthru
      _
    // Predicated region
    $region34: #{prediction_model_forward.1} parent=1 // pred_check
      _
    $region35: #{prediction_model_forward.1} parent=1 // pred_check_branch
      %70 = sbr.rel (0) target = $region37
    $region36: #{prediction_model_forward.1} parent=1 // pred_region
      %s72 = ssub.s32 16, 16
      %73 = vsyncadd [#allocation8], %s72
      %s75 = sshll.u32 [#allocation7], 4
      %s76 = int_to_ptr.vmem [resolvable:$true] %s75
      %78 = dma.hbm_to_vmem [thread:$0]  %s8, 16, %s76, [#allocation8]
    $region37: #{prediction_model_forward.1} parent=1 // pred_fallthru
      _
    // Predicated region
    $region38: #{prediction_model_forward.1} parent=1 // pred_check
      _
    $region39: #{prediction_model_forward.1} parent=1 // pred_check_branch
      %80 = sbr.rel (0) target = $region41
    $region40: #{prediction_model_forward.1} parent=1 // pred_region
      %s82 = ssub.s32 256, 256
      %83 = vsyncadd [#allocation8], %s82
      %s84 = sshll.u32 [#allocation9], 4
      %s85 = int_to_ptr.vmem [resolvable:$true] %s84
      %90 = dma.hbm_to_vmem [thread:$0]  %s9, 256, %s85, [#allocation8], 64, 64, 4
    $region41: #{prediction_model_forward.1} parent=1 // pred_fallthru
      _
    // Predicated region
    $region42: #{prediction_model_forward.1} parent=1 // pred_check
      _
    $region43: #{prediction_model_forward.1} parent=1 // pred_check_branch
      %92 = sbr.rel (0) target = $region45
    $region44: #{prediction_model_forward.1} parent=1 // pred_region
      _
    $region45: #{prediction_model_forward.1} parent=1 // pred_fallthru
      _
    // Predicated region
    $region46: #{prediction_model_forward.1} parent=1 // pred_check
      _
    $region47: #{prediction_model_forward.1} parent=1 // pred_check_branch
      %94 = sbr.rel (0) target = $region49
    $region48: #{prediction_model_forward.1} parent=1 // pred_region
      %s96 = ssub.s32 16, 16
      %97 = vsyncadd [#allocation11], %s96
      %s99 = sshll.u32 [#allocation10], 4
      %s100 = int_to_ptr.vmem [resolvable:$true] %s99
      %102 = dma.hbm_to_vmem [thread:$0]  %s11, 16, %s100, [#allocation11]
    $region49: #{prediction_model_forward.1} parent=1 // pred_fallthru
      _
    // Predicated region
    $region50: #{prediction_model_forward.1} parent=1 // pred_check
      _
    $region51: #{prediction_model_forward.1} parent=1 // pred_check_branch
      %104 = sbr.rel (0) target = $region53
    $region52: #{prediction_model_forward.1} parent=1 // pred_region
      _
    $region53: #{prediction_model_forward.1} parent=1 // pred_fallthru
      _
    // Predicated region
    $region54: #{prediction_model_forward.1} parent=1 // pred_check
      _
    $region55: #{prediction_model_forward.1} parent=1 // pred_check_branch
      %106 = sbr.rel (0) target = $region57
    $region56: #{prediction_model_forward.1} parent=1 // pred_region
      %s108 = ssub.s32 16, 16
      %109 = vsyncadd [#allocation11], %s108
      %s111 = sshll.u32 [#allocation12], 4
      %s112 = int_to_ptr.vmem [resolvable:$true] %s111
      %114 = dma.hbm_to_vmem [thread:$0]  %s13, 16, %s112, [#allocation11]
    $region57: #{prediction_model_forward.1} parent=1 // pred_fallthru
      _
    // Predicated region
    $region58: #{prediction_model_forward.1} parent=1 // pred_check
      _
    $region59: #{prediction_model_forward.1} parent=1 // pred_check_branch
      %116 = sbr.rel (0) target = $region61
    $region60: #{prediction_model_forward.1} parent=1 // pred_region
      %117 = dma.done [#allocation3], 128
    $region61: #{prediction_model_forward.1} parent=1 // pred_fallthru
      _
    // Predicated region
    $region62: #{prediction_model_forward.1} parent=1 // pred_check
      _
    $region63: #{prediction_model_forward.1} parent=1 // pred_check_branch
      %119 = sbr.rel (0) target = $region65
    $region64: #{prediction_model_forward.1} parent=1 // pred_region
      %120 = dma.done [#allocation5], 1024
    $region65: #{prediction_model_forward.1} parent=1 // pred_fallthru
      _
    // Predicated region
    $region66: #{prediction_model_forward.1} parent=1 // pred_check
      _
    $region67: #{prediction_model_forward.1} parent=1 // pred_check_branch
      %122 = sbr.rel (0) target = $region69
    $region68: #{prediction_model_forward.1} parent=1 // pred_region
      %123 = dma.done [#allocation5], 1024
    $region69: #{prediction_model_forward.1} parent=1 // pred_fallthru
      _
    // Predicated region
    $region70: #{prediction_model_forward.1} parent=1 // pred_check
      _
    $region71: #{prediction_model_forward.1} parent=1 // pred_check_branch
      %125 = sbr.rel (0) target = $region73
    $region72: #{prediction_model_forward.1} parent=1 // pred_region
      %126 = dma.done [#allocation8], 16
    $region73: #{prediction_model_forward.1} parent=1 // pred_fallthru
      _
    // Predicated region
    $region74: #{prediction_model_forward.1} parent=1 // pred_check
      _
    $region75: #{prediction_model_forward.1} parent=1 // pred_check_branch
      %128 = sbr.rel (0) target = $region77
    $region76: #{prediction_model_forward.1} parent=1 // pred_region
      %129 = dma.done [#allocation8], 256
    $region77: #{prediction_model_forward.1} parent=1 // pred_fallthru
      _
    // Predicated region
    $region78: #{prediction_model_forward.1} parent=1 // pred_check
      _
    $region79: #{prediction_model_forward.1} parent=1 // pred_check_branch
      %131 = sbr.rel (0) target = $region81
    $region80: #{prediction_model_forward.1} parent=1 // pred_region
      %132 = dma.done [#allocation11], 16
    $region81: #{prediction_model_forward.1} parent=1 // pred_fallthru
      _
    // Predicated region
    $region82: #{prediction_model_forward.1} parent=1 // pred_check
      _
    $region83: #{prediction_model_forward.1} parent=1 // pred_check_branch
      %134 = sbr.rel (0) target = $region85
    $region84: #{prediction_model_forward.1} parent=1 // pred_region
      %135 = dma.done [#allocation11], 16
    $region85: #{prediction_model_forward.1} parent=1 // pred_fallthru
      _
    %v137 = vld [vmem:[%s0] sm:$0xff]
    %v138 = vld [vmem:[%s0 + $0x8] sm:$0xff]
    %v139 = vlaneseq
    %v140 = vand.u32 %v139, 127
    %141 = vset.pattern.permute.xlu0 0
    %142 = vperm.xlu0 %141, %v137
    %v143 = vpop.permute.xlu0 %142
    %144 = vset.pattern.permute.xlu0 0
    %145 = vperm.xlu0 %144, %v138
    %v146 = vpop.permute.xlu0 %145
    %vm147 = vcmp.eq.s32.totalorder %v140, %v143
    %vm148 = vcmp.eq.s32.totalorder %v140, %v146
    %v149 = vsel %vm147, 1, 0
    %v150 = vsel %vm148, 1, 0
    %v151 = vcvt.s32.f32 %v149
    %v152 = vcvt.s32.f32 %v150
    %v153 = vpack.c.bf16 %v152, %v151
    %v154 = vld [vmem:[#allocation2] sm:$0xf]
    %v155 = vld [vmem:[#allocation2 + $0x4] sm:$0xf]
    %v158 = vunpack.c.l.b16 %v154
    %v159 = vunpack.c.l.b16 %v155
    %v160 = vpack.c.b16 %v159, %v158
    %vm162 = vcmask 130048
    %v164 = vsel %vm162, %v153, 0
    %166 = vmatprep.subr.bf16.mxu0 0
    %167 = vmatpush1.bf16.msra.mxu0 %v160
    %168 = vmatprep.subr.bf16.mxu0 0
    %169 = vmatpush1.bf16.msra.mxu0 0
    %170 = vmatprep.subr.bf16.mxu0 0
    %171 = vmatpush1.bf16.msra.mxu0 0
    %172 = vmatprep.subr.bf16.mxu0 0
    %173 = vmatpush1.bf16.msra.mxu0 0
    %174 = vmatprep.subr.bf16.mxu0 0
    %175 = vmatpush1.bf16.msra.mxu0 0
    %176 = vmatprep.subr.bf16.mxu0 0
    %177 = vmatpush1.bf16.msra.mxu0 0
    %178 = vmatprep.subr.bf16.mxu0 0
    %179 = vmatpush1.bf16.msra.mxu0 0
    %180 = vmatprep.subr.bf16.mxu0 0
    %181 = vmatpush1.bf16.msra.mxu0 0
    %182 = vmatprep.subr.bf16.mxu0 0
    %183 = vmatpush1.bf16.msra.mxu0 0
    %184 = vmatprep.subr.bf16.mxu0 0
    %185 = vmatpush1.bf16.msra.mxu0 0
    %186 = vmatprep.subr.bf16.mxu0 0
    %187 = vmatpush1.bf16.msra.mxu0 0
    %188 = vmatprep.subr.bf16.mxu0 0
    %189 = vmatpush1.bf16.msra.mxu0 0
    %190 = vmatprep.subr.bf16.mxu0 0
    %191 = vmatpush1.bf16.msra.mxu0 0
    %192 = vmatprep.subr.bf16.mxu0 0
    %193 = vmatpush1.bf16.msra.mxu0 0
    %194 = vmatprep.subr.bf16.mxu0 0
    %195 = vmatpush1.bf16.msra.mxu0 0
    %196 = vmatprep.subr.bf16.mxu0 0
    %197 = vmatpush1.bf16.msra.mxu0 0
    %198 = vmatprep.mubr.bf16.mxu0 0
    %199 = vmatmul.mubr.bf16.gmra.mrb[0].mxu0 %v164
    %v200 = vpop.f32.mrb[0].mxu0
    %v201 = vadd.f32 0.0, %v200
    %v202 = vpop.f32.mrb[0].mxu0
    %v203 = vpop.f32.mrb[0].mxu0
    %v204 = vadd.f32 0.0, %v203
    %v205 = vpop.f32.mrb[0].mxu0
    %206 = vdwg.mxu0
    %v207 = vpack.c.bf16 %v204, %v201
    %v208 = vld [vmem:[%s1] sm:$0xff]
    %v209 = vld [vmem:[%s1 + $0x8] sm:$0xff]
    %v210 = vld [vmem:[%s1 + $0x10] sm:$0xff]
    %v211 = vld [vmem:[%s1 + $0x18] sm:$0xff]
    %v212 = vld [vmem:[%s1 + $0x20] sm:$0xff]
    %v213 = vld [vmem:[%s1 + $0x28] sm:$0xff]
    %v214 = vld [vmem:[%s3] sm:$0xf]
    %v215 = vld [vmem:[%s3 + $0x4] sm:$0xf]
    %v216 = vld [vmem:[%s3 + $0x8] sm:$0xf]
    %v217 = vld [vmem:[%s3 + $0xc] sm:$0xf]
    %v218 = vld [vmem:[%s3 + $0x10] sm:$0xf]
    %v219 = vld [vmem:[%s3 + $0x14] sm:$0xf]
    %v220 = vld [vmem:[%s3 + $0x18] sm:$0xf]
    %v221 = vld [vmem:[%s3 + $0x1c] sm:$0xf]
    %v222 = vld [vmem:[%s3 + $0x20] sm:$0xf]
    %v223 = vld [vmem:[%s3 + $0x24] sm:$0xf]
    %v224 = vld [vmem:[%s3 + $0x28] sm:$0xf]
    %v225 = vld [vmem:[%s3 + $0x2c] sm:$0xf]
    %v226 = vld [vmem:[%s3 + $0x30] sm:$0xf]
    %v227 = vld [vmem:[%s3 + $0x34] sm:$0xf]
    %v228 = vld [vmem:[%s3 + $0x38] sm:$0xf]
    %v229 = vld [vmem:[%s3 + $0x3c] sm:$0xf]
    %v230 = vld [vmem:[%s3 + $0x40] sm:$0xf]
    %v231 = vld [vmem:[%s3 + $0x44] sm:$0xf]
    %v232 = vld [vmem:[%s3 + $0x48] sm:$0xf]
    %v233 = vld [vmem:[%s3 + $0x4c] sm:$0xf]
    %v234 = vld [vmem:[%s3 + $0x50] sm:$0xf]
    %v235 = vld [vmem:[%s3 + $0x54] sm:$0xf]
    %v236 = vld [vmem:[%s3 + $0x58] sm:$0xf]
    %v237 = vld [vmem:[%s3 + $0x5c] sm:$0xf]
    %v238 = vld [vmem:[%s3 + $0x60] sm:$0xf]
    %v239 = vld [vmem:[%s3 + $0x64] sm:$0xf]
    %v240 = vld [vmem:[%s3 + $0x68] sm:$0xf]
    %v241 = vld [vmem:[%s3 + $0x6c] sm:$0xf]
    %v242 = vld [vmem:[%s3 + $0x70] sm:$0xf]
    %v243 = vld [vmem:[%s3 + $0x74] sm:$0xf]
    %v244 = vld [vmem:[%s3 + $0x78] sm:$0xf]
    %v245 = vld [vmem:[%s3 + $0x7c] sm:$0xf]
    %v246 = vld [vmem:[%s3 + $0x80] sm:$0xf]
    %v247 = vld [vmem:[%s3 + $0x84] sm:$0xf]
    %v248 = vld [vmem:[%s3 + $0x88] sm:$0xf]
    %v249 = vld [vmem:[%s3 + $0x8c] sm:$0xf]
    %v250 = vld [vmem:[%s3 + $0x90] sm:$0xf]
    %v251 = vld [vmem:[%s3 + $0x94] sm:$0xf]
    %v252 = vld [vmem:[%s3 + $0x98] sm:$0xf]
    %v253 = vld [vmem:[%s3 + $0x9c] sm:$0xf]
    %v254 = vld [vmem:[%s3 + $0xa0] sm:$0xf]
    %v255 = vld [vmem:[%s3 + $0xa4] sm:$0xf]
    %v256 = vld [vmem:[%s3 + $0xa8] sm:$0xf]
    %v257 = vld [vmem:[%s3 + $0xac] sm:$0xf]
    %v258 = vld [vmem:[%s3 + $0xb0] sm:$0xf]
    %v259 = vld [vmem:[%s3 + $0xb4] sm:$0xf]
    %v260 = vld [vmem:[%s3 + $0xb8] sm:$0xf]
    %v261 = vld [vmem:[%s3 + $0xbc] sm:$0xf]
    %v262 = vld [vmem:[%s3 + $0xc0] sm:$0xf]
    %v263 = vld [vmem:[%s3 + $0xc4] sm:$0xf]
    %v264 = vld [vmem:[%s3 + $0xc8] sm:$0xf]
    %v265 = vld [vmem:[%s3 + $0xcc] sm:$0xf]
    %v266 = vld [vmem:[%s3 + $0xd0] sm:$0xf]
    %v267 = vld [vmem:[%s3 + $0xd4] sm:$0xf]
    %v268 = vld [vmem:[%s3 + $0xd8] sm:$0xf]
    %v269 = vld [vmem:[%s3 + $0xdc] sm:$0xf]
    %v270 = vld [vmem:[%s3 + $0xe0] sm:$0xf]
    %v271 = vld [vmem:[%s3 + $0xe4] sm:$0xf]
    %v272 = vld [vmem:[%s3 + $0xe8] sm:$0xf]
    %v273 = vld [vmem:[%s3 + $0xec] sm:$0xf]
    %v274 = vld [vmem:[%s3 + $0xf0] sm:$0xf]
    %v275 = vld [vmem:[%s3 + $0xf4] sm:$0xf]
    %v276 = vld [vmem:[%s3 + $0xf8] sm:$0xf]
    %v277 = vld [vmem:[%s3 + $0xfc] sm:$0xf]
    %v278 = vld [vmem:[%s3 + $0x100] sm:$0xf]
    %v279 = vld [vmem:[%s3 + $0x104] sm:$0xf]
    %v280 = vld [vmem:[%s3 + $0x108] sm:$0xf]
    %v281 = vld [vmem:[%s3 + $0x10c] sm:$0xf]
    %v282 = vld [vmem:[%s3 + $0x110] sm:$0xf]
    %v283 = vld [vmem:[%s3 + $0x114] sm:$0xf]
    %v284 = vld [vmem:[%s3 + $0x118] sm:$0xf]
    %v285 = vld [vmem:[%s3 + $0x11c] sm:$0xf]
    %v286 = vld [vmem:[%s3 + $0x120] sm:$0xf]
    %v287 = vld [vmem:[%s3 + $0x124] sm:$0xf]
    %v288 = vld [vmem:[%s3 + $0x128] sm:$0xf]
    %v289 = vld [vmem:[%s3 + $0x12c] sm:$0xf]
    %v290 = vld [vmem:[%s3 + $0x130] sm:$0xf]
    %v291 = vld [vmem:[%s3 + $0x134] sm:$0xf]
    %v292 = vld [vmem:[%s3 + $0x138] sm:$0xf]
    %v293 = vld [vmem:[%s3 + $0x13c] sm:$0xf]
    %v294 = vld [vmem:[%s3 + $0x140] sm:$0xf]
    %v295 = vld [vmem:[%s3 + $0x144] sm:$0xf]
    %v296 = vld [vmem:[%s3 + $0x148] sm:$0xf]
    %v297 = vld [vmem:[%s3 + $0x14c] sm:$0xf]
    %v298 = vld [vmem:[%s3 + $0x150] sm:$0xf]
    %v299 = vld [vmem:[%s3 + $0x154] sm:$0xf]
    %v300 = vld [vmem:[%s3 + $0x158] sm:$0xf]
    %v301 = vld [vmem:[%s3 + $0x15c] sm:$0xf]
    %v302 = vld [vmem:[%s3 + $0x160] sm:$0xf]
    %v303 = vld [vmem:[%s3 + $0x164] sm:$0xf]
    %v304 = vld [vmem:[%s3 + $0x168] sm:$0xf]
    %v305 = vld [vmem:[%s3 + $0x16c] sm:$0xf]
    %v306 = vld [vmem:[%s3 + $0x170] sm:$0xf]
    %v307 = vld [vmem:[%s3 + $0x174] sm:$0xf]
    %v308 = vld [vmem:[%s3 + $0x178] sm:$0xf]
    %v309 = vld [vmem:[%s3 + $0x17c] sm:$0xf]
    %v310 = vld [vmem:[%s4] sm:$0x1]
    %v312 = vlaneseq
    %v313 = vshrl.u32 %v312, 7
    %v314 = vsub.s32 0, %v313
    %v315 = vrot.slane %v310, %v314
    %v323 = vunpack.c.l.b16 %v208
    %v324 = vunpack.c.h.b16 %v208
    %v325 = vunpack.c.l.b16 %v209
    %v326 = vunpack.c.h.b16 %v209
    %v327 = vunpack.c.l.b16 %v210
    %v328 = vunpack.c.h.b16 %v210
    %v329 = vunpack.c.l.b16 %v211
    %v330 = vunpack.c.h.b16 %v211
    %v331 = vunpack.c.l.b16 %v212
    %v332 = vunpack.c.h.b16 %v212
    %v333 = vunpack.c.l.b16 %v213
    %v334 = vunpack.c.h.b16 %v213
    %v335 = vpack.c.b16 %v329, %v323
    %v336 = vpack.c.b16 %v330, %v324
    %v337 = vpack.c.b16 %v331, %v325
    %v338 = vpack.c.b16 %v332, %v326
    %v339 = vpack.c.b16 %v333, %v327
    %v340 = vpack.c.b16 %v334, %v328
    %v443 = vunpack.c.l.b16 %v214
    %v444 = vunpack.c.l.b16 %v215
    %v445 = vunpack.c.l.b16 %v216
    %v446 = vunpack.c.l.b16 %v217
    %v447 = vunpack.c.l.b16 %v218
    %v448 = vunpack.c.l.b16 %v219
    %v449 = vunpack.c.l.b16 %v220
    %v450 = vunpack.c.l.b16 %v221
    %v451 = vunpack.c.l.b16 %v222
    %v452 = vunpack.c.l.b16 %v223
    %v453 = vunpack.c.l.b16 %v224
    %v454 = vunpack.c.l.b16 %v225
    %v455 = vunpack.c.l.b16 %v226
    %v456 = vunpack.c.l.b16 %v227
    %v457 = vunpack.c.l.b16 %v228
    %v458 = vunpack.c.l.b16 %v229
    %v459 = vunpack.c.l.b16 %v230
    %v460 = vunpack.c.l.b16 %v231
    %v461 = vunpack.c.l.b16 %v232
    %v462 = vunpack.c.l.b16 %v233
    %v463 = vunpack.c.l.b16 %v234
    %v464 = vunpack.c.l.b16 %v235
    %v465 = vunpack.c.l.b16 %v236
    %v466 = vunpack.c.l.b16 %v237
    %v467 = vunpack.c.l.b16 %v238
    %v468 = vunpack.c.l.b16 %v239
    %v469 = vunpack.c.l.b16 %v240
    %v470 = vunpack.c.l.b16 %v241
    %v471 = vunpack.c.l.b16 %v242
    %v472 = vunpack.c.l.b16 %v243
    %v473 = vunpack.c.l.b16 %v244
    %v474 = vunpack.c.l.b16 %v245
    %v475 = vunpack.c.l.b16 %v246
    %v476 = vunpack.c.l.b16 %v247
    %v477 = vunpack.c.l.b16 %v248
    %v478 = vunpack.c.l.b16 %v249
    %v479 = vunpack.c.l.b16 %v250
    %v480 = vunpack.c.l.b16 %v251
    %v481 = vunpack.c.l.b16 %v252
    %v482 = vunpack.c.l.b16 %v253
    %v483 = vunpack.c.l.b16 %v254
    %v484 = vunpack.c.l.b16 %v255
    %v485 = vunpack.c.l.b16 %v256
    %v486 = vunpack.c.l.b16 %v257
    %v487 = vunpack.c.l.b16 %v258
    %v488 = vunpack.c.l.b16 %v259
    %v489 = vunpack.c.l.b16 %v260
    %v490 = vunpack.c.l.b16 %v261
    %v491 = vunpack.c.l.b16 %v262
    %v492 = vunpack.c.l.b16 %v263
    %v493 = vunpack.c.l.b16 %v264
    %v494 = vunpack.c.l.b16 %v265
    %v495 = vunpack.c.l.b16 %v266
    %v496 = vunpack.c.l.b16 %v267
    %v497 = vunpack.c.l.b16 %v268
    %v498 = vunpack.c.l.b16 %v269
    %v499 = vunpack.c.l.b16 %v270
    %v500 = vunpack.c.l.b16 %v271
    %v501 = vunpack.c.l.b16 %v272
    %v502 = vunpack.c.l.b16 %v273
    %v503 = vunpack.c.l.b16 %v274
    %v504 = vunpack.c.l.b16 %v275
    %v505 = vunpack.c.l.b16 %v276
    %v506 = vunpack.c.l.b16 %v277
    %v507 = vunpack.c.l.b16 %v278
    %v508 = vunpack.c.l.b16 %v279
    %v509 = vunpack.c.l.b16 %v280
    %v510 = vunpack.c.l.b16 %v281
    %v511 = vunpack.c.l.b16 %v282
    %v512 = vunpack.c.l.b16 %v283
    %v513 = vunpack.c.l.b16 %v284
    %v514 = vunpack.c.l.b16 %v285
    %v515 = vunpack.c.l.b16 %v286
    %v516 = vunpack.c.l.b16 %v287
    %v517 = vunpack.c.l.b16 %v288
    %v518 = vunpack.c.l.b16 %v289
    %v519 = vunpack.c.l.b16 %v290
    %v520 = vunpack.c.l.b16 %v291
    %v521 = vunpack.c.l.b16 %v292
    %v522 = vunpack.c.l.b16 %v293
    %v523 = vunpack.c.l.b16 %v294
    %v524 = vunpack.c.l.b16 %v295
    %v525 = vunpack.c.l.b16 %v296
    %v526 = vunpack.c.l.b16 %v297
    %v527 = vunpack.c.l.b16 %v298
    %v528 = vunpack.c.l.b16 %v299
    %v529 = vunpack.c.l.b16 %v300
    %v530 = vunpack.c.l.b16 %v301
    %v531 = vunpack.c.l.b16 %v302
    %v532 = vunpack.c.l.b16 %v303
    %v533 = vunpack.c.l.b16 %v304
    %v534 = vunpack.c.l.b16 %v305
    %v535 = vunpack.c.l.b16 %v306
    %v536 = vunpack.c.l.b16 %v307
    %v537 = vunpack.c.l.b16 %v308
    %v538 = vunpack.c.l.b16 %v309
    %v539 = vpack.c.b16 %v444, %v443
    %v540 = vpack.c.b16 %v446, %v445
    %v541 = vpack.c.b16 %v448, %v447
    %v542 = vpack.c.b16 %v450, %v449
    %v543 = vpack.c.b16 %v452, %v451
    %v544 = vpack.c.b16 %v454, %v453
    %v545 = vpack.c.b16 %v456, %v455
    %v546 = vpack.c.b16 %v458, %v457
    %v547 = vpack.c.b16 %v460, %v459
    %v548 = vpack.c.b16 %v462, %v461
    %v549 = vpack.c.b16 %v464, %v463
    %v550 = vpack.c.b16 %v466, %v465
    %v551 = vpack.c.b16 %v468, %v467
    %v552 = vpack.c.b16 %v470, %v469
    %v553 = vpack.c.b16 %v472, %v471
    %v554 = vpack.c.b16 %v474, %v473
    %v555 = vpack.c.b16 %v476, %v475
    %v556 = vpack.c.b16 %v478, %v477
    %v557 = vpack.c.b16 %v480, %v479
    %v558 = vpack.c.b16 %v482, %v481
    %v559 = vpack.c.b16 %v484, %v483
    %v560 = vpack.c.b16 %v486, %v485
    %v561 = vpack.c.b16 %v488, %v487
    %v562 = vpack.c.b16 %v490, %v489
    %v563 = vpack.c.b16 %v492, %v491
    %v564 = vpack.c.b16 %v494, %v493
    %v565 = vpack.c.b16 %v496, %v495
    %v566 = vpack.c.b16 %v498, %v497
    %v567 = vpack.c.b16 %v500, %v499
    %v568 = vpack.c.b16 %v502, %v501
    %v569 = vpack.c.b16 %v504, %v503
    %v570 = vpack.c.b16 %v506, %v505
    %v571 = vpack.c.b16 %v508, %v507
    %v572 = vpack.c.b16 %v510, %v509
    %v573 = vpack.c.b16 %v512, %v511
    %v574 = vpack.c.b16 %v514, %v513
    %v575 = vpack.c.b16 %v516, %v515
    %v576 = vpack.c.b16 %v518, %v517
    %v577 = vpack.c.b16 %v520, %v519
    %v578 = vpack.c.b16 %v522, %v521
    %v579 = vpack.c.b16 %v524, %v523
    %v580 = vpack.c.b16 %v526, %v525
    %v581 = vpack.c.b16 %v528, %v527
    %v582 = vpack.c.b16 %v530, %v529
    %v583 = vpack.c.b16 %v532, %v531
    %v584 = vpack.c.b16 %v534, %v533
    %v585 = vpack.c.b16 %v536, %v535
    %v586 = vpack.c.b16 %v538, %v537
    %635 = vmatprep.subr.bf16.mxu0 0
    %636 = vmatpush1.bf16.msra.mxu0 %v539
    %637 = vmatprep.subr.bf16.mxu0 0
    %638 = vmatpush1.bf16.msra.mxu0 %v540
    %639 = vmatprep.subr.bf16.mxu0 0
    %640 = vmatpush1.bf16.msra.mxu0 %v541
    %641 = vmatprep.subr.bf16.mxu0 0
    %642 = vmatpush1.bf16.msra.mxu0 %v542
    %643 = vmatprep.subr.bf16.mxu0 0
    %644 = vmatpush1.bf16.msra.mxu0 %v543
    %645 = vmatprep.subr.bf16.mxu0 0
    %646 = vmatpush1.bf16.msra.mxu0 %v544
    %647 = vmatprep.subr.bf16.mxu0 0
    %648 = vmatpush1.bf16.msra.mxu0 %v545
    %649 = vmatprep.subr.bf16.mxu0 0
    %650 = vmatpush1.bf16.msra.mxu0 %v546
    %651 = vmatprep.subr.bf16.mxu0 0
    %652 = vmatpush1.bf16.msra.mxu0 %v547
    %653 = vmatprep.subr.bf16.mxu0 0
    %654 = vmatpush1.bf16.msra.mxu0 %v548
    %655 = vmatprep.subr.bf16.mxu0 0
    %656 = vmatpush1.bf16.msra.mxu0 %v549
    %657 = vmatprep.subr.bf16.mxu0 0
    %658 = vmatpush1.bf16.msra.mxu0 %v550
    %659 = vmatprep.subr.bf16.mxu0 0
    %660 = vmatpush1.bf16.msra.mxu0 %v551
    %661 = vmatprep.subr.bf16.mxu0 0
    %662 = vmatpush1.bf16.msra.mxu0 %v552
    %663 = vmatprep.subr.bf16.mxu0 0
    %664 = vmatpush1.bf16.msra.mxu0 %v553
    %665 = vmatprep.subr.bf16.mxu0 0
    %666 = vmatpush1.bf16.msra.mxu0 %v554
    %667 = vmatprep.mubr.bf16.mxu0 %v336
    %668 = vmatmul.mubr.bf16.gmra.mrb[0].mxu0 %v335
    %v669 = vpop.f32.mrb[0].mxu0
    %v670 = vadd.f32 %v315, %v669
    %v671 = vpop.f32.mrb[0].mxu0
    %v672 = vpop.f32.mrb[0].mxu0
    %v673 = vadd.f32 %v315, %v672
    %v674 = vpop.f32.mrb[0].mxu0
    %675 = vdwg.mxu0
    %676 = vmatprep.subr.bf16.mxu0 0
    %677 = vmatpush1.bf16.msra.mxu0 %v555
    %678 = vmatprep.subr.bf16.mxu0 0
    %679 = vmatpush1.bf16.msra.mxu0 %v556
    %680 = vmatprep.subr.bf16.mxu0 0
    %681 = vmatpush1.bf16.msra.mxu0 %v557
    %682 = vmatprep.subr.bf16.mxu0 0
    %683 = vmatpush1.bf16.msra.mxu0 %v558
    %684 = vmatprep.subr.bf16.mxu0 0
    %685 = vmatpush1.bf16.msra.mxu0 %v559
    %686 = vmatprep.subr.bf16.mxu0 0
    %687 = vmatpush1.bf16.msra.mxu0 %v560
    %688 = vmatprep.subr.bf16.mxu0 0
    %689 = vmatpush1.bf16.msra.mxu0 %v561
    %690 = vmatprep.subr.bf16.mxu0 0
    %691 = vmatpush1.bf16.msra.mxu0 %v562
    %692 = vmatprep.subr.bf16.mxu0 0
    %693 = vmatpush1.bf16.msra.mxu0 %v563
    %694 = vmatprep.subr.bf16.mxu0 0
    %695 = vmatpush1.bf16.msra.mxu0 %v564
    %696 = vmatprep.subr.bf16.mxu0 0
    %697 = vmatpush1.bf16.msra.mxu0 %v565
    %698 = vmatprep.subr.bf16.mxu0 0
    %699 = vmatpush1.bf16.msra.mxu0 %v566
    %700 = vmatprep.subr.bf16.mxu0 0
    %701 = vmatpush1.bf16.msra.mxu0 %v567
    %702 = vmatprep.subr.bf16.mxu0 0
    %703 = vmatpush1.bf16.msra.mxu0 %v568
    %704 = vmatprep.subr.bf16.mxu0 0
    %705 = vmatpush1.bf16.msra.mxu0 %v569
    %706 = vmatprep.subr.bf16.mxu0 0
    %707 = vmatpush1.bf16.msra.mxu0 %v570
    %708 = vmatprep.mubr.bf16.mxu0 %v338
    %709 = vmatmul.mubr.bf16.gmra.mrb[0].mxu0 %v337
    %v710 = vpop.f32.mrb[0].mxu0
    %v711 = vadd.f32 %v670, %v710
    %v712 = vpop.f32.mrb[0].mxu0
    %v713 = vpop.f32.mrb[0].mxu0
    %v714 = vadd.f32 %v673, %v713
    %v715 = vpop.f32.mrb[0].mxu0
    %716 = vdwg.mxu0
    %717 = vmatprep.subr.bf16.mxu0 0
    %718 = vmatpush1.bf16.msra.mxu0 %v571
    %719 = vmatprep.subr.bf16.mxu0 0
    %720 = vmatpush1.bf16.msra.mxu0 %v572
    %721 = vmatprep.subr.bf16.mxu0 0
    %722 = vmatpush1.bf16.msra.mxu0 %v573
    %723 = vmatprep.subr.bf16.mxu0 0
    %724 = vmatpush1.bf16.msra.mxu0 %v574
    %725 = vmatprep.subr.bf16.mxu0 0
    %726 = vmatpush1.bf16.msra.mxu0 %v575
    %727 = vmatprep.subr.bf16.mxu0 0
    %728 = vmatpush1.bf16.msra.mxu0 %v576
    %729 = vmatprep.subr.bf16.mxu0 0
    %730 = vmatpush1.bf16.msra.mxu0 %v577
    %731 = vmatprep.subr.bf16.mxu0 0
    %732 = vmatpush1.bf16.msra.mxu0 %v578
    %733 = vmatprep.subr.bf16.mxu0 0
    %734 = vmatpush1.bf16.msra.mxu0 %v579
    %735 = vmatprep.subr.bf16.mxu0 0
    %736 = vmatpush1.bf16.msra.mxu0 %v580
    %737 = vmatprep.subr.bf16.mxu0 0
    %738 = vmatpush1.bf16.msra.mxu0 %v581
    %739 = vmatprep.subr.bf16.mxu0 0
    %740 = vmatpush1.bf16.msra.mxu0 %v582
    %741 = vmatprep.subr.bf16.mxu0 0
    %742 = vmatpush1.bf16.msra.mxu0 %v583
    %743 = vmatprep.subr.bf16.mxu0 0
    %744 = vmatpush1.bf16.msra.mxu0 %v584
    %745 = vmatprep.subr.bf16.mxu0 0
    %746 = vmatpush1.bf16.msra.mxu0 %v585
    %747 = vmatprep.subr.bf16.mxu0 0
    %748 = vmatpush1.bf16.msra.mxu0 %v586
    %749 = vmatprep.mubr.bf16.mxu0 %v340
    %750 = vmatmul.mubr.bf16.gmra.mrb[0].mxu0 %v339
    %v751 = vpop.f32.mrb[0].mxu0
    %v752 = vadd.f32 %v711, %v751
    %v753 = vpop.f32.mrb[0].mxu0
    %v754 = vpop.f32.mrb[0].mxu0
    %v755 = vadd.f32 %v714, %v754
    %v756 = vpop.f32.mrb[0].mxu0
    %757 = vdwg.mxu0
    %v758 = vmax.f32 %v752, 0.0
    %v759 = vmax.f32 %v755, 0.0
    %v760 = vpack.c.bf16 %v759, %v758
    %v761 = vld [vmem:[#allocation4] sm:$0xf]
    %v762 = vld [vmem:[#allocation4 + $0x4] sm:$0xf]
    %v763 = vld [vmem:[#allocation4 + $0x8] sm:$0xf]
    %v764 = vld [vmem:[#allocation4 + $0xc] sm:$0xf]
    %v765 = vld [vmem:[#allocation4 + $0x10] sm:$0xf]
    %v766 = vld [vmem:[#allocation4 + $0x14] sm:$0xf]
    %v767 = vld [vmem:[#allocation4 + $0x18] sm:$0xf]
    %v768 = vld [vmem:[#allocation4 + $0x1c] sm:$0xf]
    %v769 = vld [vmem:[#allocation4 + $0x20] sm:$0xf]
    %v770 = vld [vmem:[#allocation4 + $0x24] sm:$0xf]
    %v771 = vld [vmem:[#allocation4 + $0x28] sm:$0xf]
    %v772 = vld [vmem:[#allocation4 + $0x2c] sm:$0xf]
    %v773 = vld [vmem:[#allocation4 + $0x30] sm:$0xf]
    %v774 = vld [vmem:[#allocation4 + $0x34] sm:$0xf]
    %v775 = vld [vmem:[#allocation4 + $0x38] sm:$0xf]
    %v776 = vld [vmem:[#allocation4 + $0x3c] sm:$0xf]
    %v777 = vld [vmem:[%s6] sm:$0x1]
    %v779 = vlaneseq
    %v780 = vshrl.u32 %v779, 7
    %v781 = vsub.s32 0, %v780
    %v782 = vrot.slane %v777, %v781
    %v800 = vunpack.c.l.b16 %v761
    %v801 = vunpack.c.l.b16 %v762
    %v802 = vunpack.c.l.b16 %v763
    %v803 = vunpack.c.l.b16 %v764
    %v804 = vunpack.c.l.b16 %v765
    %v805 = vunpack.c.l.b16 %v766
    %v806 = vunpack.c.l.b16 %v767
    %v807 = vunpack.c.l.b16 %v768
    %v808 = vunpack.c.l.b16 %v769
    %v809 = vunpack.c.l.b16 %v770
    %v810 = vunpack.c.l.b16 %v771
    %v811 = vunpack.c.l.b16 %v772
    %v812 = vunpack.c.l.b16 %v773
    %v813 = vunpack.c.l.b16 %v774
    %v814 = vunpack.c.l.b16 %v775
    %v815 = vunpack.c.l.b16 %v776
    %v816 = vpack.c.b16 %v801, %v800
    %v817 = vpack.c.b16 %v803, %v802
    %v818 = vpack.c.b16 %v805, %v804
    %v819 = vpack.c.b16 %v807, %v806
    %v820 = vpack.c.b16 %v809, %v808
    %v821 = vpack.c.b16 %v811, %v810
    %v822 = vpack.c.b16 %v813, %v812
    %v823 = vpack.c.b16 %v815, %v814
    %832 = vmatprep.subr.bf16.mxu0 0
    %833 = vmatpush1.bf16.msra.mxu0 %v816
    %834 = vmatprep.subr.bf16.mxu0 0
    %835 = vmatpush1.bf16.msra.mxu0 %v817
    %836 = vmatprep.subr.bf16.mxu0 0
    %837 = vmatpush1.bf16.msra.mxu0 %v818
    %838 = vmatprep.subr.bf16.mxu0 0
    %839 = vmatpush1.bf16.msra.mxu0 %v819
    %840 = vmatprep.subr.bf16.mxu0 0
    %841 = vmatpush1.bf16.msra.mxu0 %v820
    %842 = vmatprep.subr.bf16.mxu0 0
    %843 = vmatpush1.bf16.msra.mxu0 %v821
    %844 = vmatprep.subr.bf16.mxu0 0
    %845 = vmatpush1.bf16.msra.mxu0 %v822
    %846 = vmatprep.subr.bf16.mxu0 0
    %847 = vmatpush1.bf16.msra.mxu0 %v823
    %848 = vmatprep.subr.bf16.mxu0 0
    %849 = vmatpush1.bf16.msra.mxu0 0
    %850 = vmatprep.subr.bf16.mxu0 0
    %851 = vmatpush1.bf16.msra.mxu0 0
    %852 = vmatprep.subr.bf16.mxu0 0
    %853 = vmatpush1.bf16.msra.mxu0 0
    %854 = vmatprep.subr.bf16.mxu0 0
    %855 = vmatpush1.bf16.msra.mxu0 0
    %856 = vmatprep.subr.bf16.mxu0 0
    %857 = vmatpush1.bf16.msra.mxu0 0
    %858 = vmatprep.subr.bf16.mxu0 0
    %859 = vmatpush1.bf16.msra.mxu0 0
    %860 = vmatprep.subr.bf16.mxu0 0
    %861 = vmatpush1.bf16.msra.mxu0 0
    %862 = vmatprep.subr.bf16.mxu0 0
    %863 = vmatpush1.bf16.msra.mxu0 0
    %864 = vmatprep.mubr.bf16.mxu0 0
    %865 = vmatmul.mubr.bf16.gmra.mrb[0].mxu0 %v760
    %v866 = vpop.f32.mrb[0].mxu0
    %v867 = vadd.f32 %v782, %v866
    %v868 = vpop.f32.mrb[0].mxu0
    %v869 = vpop.f32.mrb[0].mxu0
    %v870 = vadd.f32 %v782, %v869
    %v871 = vpop.f32.mrb[0].mxu0
    %872 = vdwg.mxu0
    %v873 = vmax.f32 %v867, 0.0
    %v874 = vmax.f32 %v870, 0.0
    %v875 = vpack.c.bf16 %v874, %v873
    %v876 = vld [vmem:[#allocation6] sm:$0xf]
    %v877 = vld [vmem:[#allocation6 + $0x4] sm:$0xf]
    %v878 = vld [vmem:[#allocation6 + $0x8] sm:$0xf]
    %v879 = vld [vmem:[#allocation6 + $0xc] sm:$0xf]
    %v880 = vld [vmem:[#allocation6 + $0x10] sm:$0xf]
    %v881 = vld [vmem:[#allocation6 + $0x14] sm:$0xf]
    %v882 = vld [vmem:[#allocation6 + $0x18] sm:$0xf]
    %v883 = vld [vmem:[#allocation6 + $0x1c] sm:$0xf]
    %v884 = vld [vmem:[#allocation6 + $0x20] sm:$0xf]
    %v885 = vld [vmem:[#allocation6 + $0x24] sm:$0xf]
    %v886 = vld [vmem:[#allocation6 + $0x28] sm:$0xf]
    %v887 = vld [vmem:[#allocation6 + $0x2c] sm:$0xf]
    %v888 = vld [vmem:[#allocation6 + $0x30] sm:$0xf]
    %v889 = vld [vmem:[#allocation6 + $0x34] sm:$0xf]
    %v890 = vld [vmem:[#allocation6 + $0x38] sm:$0xf]
    %v891 = vld [vmem:[#allocation6 + $0x3c] sm:$0xf]
    %v892 = vld [vmem:[#allocation7] sm:$0x1]
    %v894 = vlaneseq
    %v895 = vshrl.u32 %v894, 7
    %v896 = vsub.s32 0, %v895
    %v897 = vrot.slane %v892, %v896
    %v915 = vunpack.c.l.b16 %v876
    %v916 = vunpack.c.l.b16 %v877
    %v917 = vunpack.c.l.b16 %v878
    %v918 = vunpack.c.l.b16 %v879
    %v919 = vunpack.c.l.b16 %v880
    %v920 = vunpack.c.l.b16 %v881
    %v921 = vunpack.c.l.b16 %v882
    %v922 = vunpack.c.l.b16 %v883
    %v923 = vunpack.c.l.b16 %v884
    %v924 = vunpack.c.l.b16 %v885
    %v925 = vunpack.c.l.b16 %v886
    %v926 = vunpack.c.l.b16 %v887
    %v927 = vunpack.c.l.b16 %v888
    %v928 = vunpack.c.l.b16 %v889
    %v929 = vunpack.c.l.b16 %v890
    %v930 = vunpack.c.l.b16 %v891
    %v931 = vpack.c.b16 %v916, %v915
    %v932 = vpack.c.b16 %v918, %v917
    %v933 = vpack.c.b16 %v920, %v919
    %v934 = vpack.c.b16 %v922, %v921
    %v935 = vpack.c.b16 %v924, %v923
    %v936 = vpack.c.b16 %v926, %v925
    %v937 = vpack.c.b16 %v928, %v927
    %v938 = vpack.c.b16 %v930, %v929
    %947 = vmatprep.subr.bf16.mxu0 0
    %948 = vmatpush1.bf16.msra.mxu0 %v931
    %949 = vmatprep.subr.bf16.mxu0 0
    %950 = vmatpush1.bf16.msra.mxu0 %v932
    %951 = vmatprep.subr.bf16.mxu0 0
    %952 = vmatpush1.bf16.msra.mxu0 %v933
    %953 = vmatprep.subr.bf16.mxu0 0
    %954 = vmatpush1.bf16.msra.mxu0 %v934
    %955 = vmatprep.subr.bf16.mxu0 0
    %956 = vmatpush1.bf16.msra.mxu0 %v935
    %957 = vmatprep.subr.bf16.mxu0 0
    %958 = vmatpush1.bf16.msra.mxu0 %v936
    %959 = vmatprep.subr.bf16.mxu0 0
    %960 = vmatpush1.bf16.msra.mxu0 %v937
    %961 = vmatprep.subr.bf16.mxu0 0
    %962 = vmatpush1.bf16.msra.mxu0 %v938
    %963 = vmatprep.subr.bf16.mxu0 0
    %964 = vmatpush1.bf16.msra.mxu0 0
    %965 = vmatprep.subr.bf16.mxu0 0
    %966 = vmatpush1.bf16.msra.mxu0 0
    %967 = vmatprep.subr.bf16.mxu0 0
    %968 = vmatpush1.bf16.msra.mxu0 0
    %969 = vmatprep.subr.bf16.mxu0 0
    %970 = vmatpush1.bf16.msra.mxu0 0
    %971 = vmatprep.subr.bf16.mxu0 0
    %972 = vmatpush1.bf16.msra.mxu0 0
    %973 = vmatprep.subr.bf16.mxu0 0
    %974 = vmatpush1.bf16.msra.mxu0 0
    %975 = vmatprep.subr.bf16.mxu0 0
    %976 = vmatpush1.bf16.msra.mxu0 0
    %977 = vmatprep.subr.bf16.mxu0 0
    %978 = vmatpush1.bf16.msra.mxu0 0
    %979 = vmatprep.mubr.bf16.mxu0 0
    %980 = vmatmul.mubr.bf16.gmra.mrb[0].mxu0 %v875
    %v981 = vpop.f32.mrb[0].mxu0
    %v982 = vadd.f32 %v897, %v981
    %v983 = vpop.f32.mrb[0].mxu0
    %v984 = vpop.f32.mrb[0].mxu0
    %v985 = vadd.f32 %v897, %v984
    %v986 = vpop.f32.mrb[0].mxu0
    %987 = vdwg.mxu0
    %v988 = vmax.f32 %v982, 0.0
    %v989 = vmax.f32 %v985, 0.0
    %v990 = vpack.c.bf16 %v989, %v988
    %v991 = vld [vmem:[#allocation9] sm:$0xf]
    %v992 = vld [vmem:[#allocation9 + $0x4] sm:$0xf]
    %v993 = vld [vmem:[#allocation9 + $0x8] sm:$0xf]
    %v994 = vld [vmem:[#allocation9 + $0xc] sm:$0xf]
    %v995 = vld [vmem:[%s10] sm:$0xf]
    %v996 = vld [vmem:[%s10 + $0x4] sm:$0xf]
    %v997 = vld [vmem:[%s10 + $0x8] sm:$0xf]
    %v998 = vld [vmem:[%s10 + $0xc] sm:$0xf]
    %v999 = vld [vmem:[%s10 + $0x10] sm:$0xf]
    %v1000 = vld [vmem:[%s10 + $0x14] sm:$0xf]
    %v1001 = vld [vmem:[%s10 + $0x18] sm:$0xf]
    %v1002 = vld [vmem:[%s10 + $0x1c] sm:$0xf]
    %v1003 = vld [vmem:[%s10 + $0x20] sm:$0xf]
    %v1004 = vld [vmem:[%s10 + $0x24] sm:$0xf]
    %v1005 = vld [vmem:[%s10 + $0x28] sm:$0xf]
    %v1006 = vld [vmem:[%s10 + $0x2c] sm:$0xf]
    %v1007 = vld [vmem:[%s10 + $0x30] sm:$0xf]
    %v1008 = vld [vmem:[%s10 + $0x34] sm:$0xf]
    %v1009 = vld [vmem:[%s10 + $0x38] sm:$0xf]
    %v1010 = vld [vmem:[%s10 + $0x3c] sm:$0xf]
    %v1027 = vunpack.c.l.b16 %v995
    %v1028 = vunpack.c.l.b16 %v996
    %v1029 = vunpack.c.l.b16 %v997
    %v1030 = vunpack.c.l.b16 %v998
    %v1031 = vunpack.c.l.b16 %v999
    %v1032 = vunpack.c.l.b16 %v1000
    %v1033 = vunpack.c.l.b16 %v1001
    %v1034 = vunpack.c.l.b16 %v1002
    %v1035 = vunpack.c.l.b16 %v1003
    %v1036 = vunpack.c.l.b16 %v1004
    %v1037 = vunpack.c.l.b16 %v1005
    %v1038 = vunpack.c.l.b16 %v1006
    %v1039 = vunpack.c.l.b16 %v1007
    %v1040 = vunpack.c.l.b16 %v1008
    %v1041 = vunpack.c.l.b16 %v1009
    %v1042 = vunpack.c.l.b16 %v1010
    %v1043 = vpack.c.b16 %v1028, %v1027
    %v1044 = vpack.c.b16 %v1030, %v1029
    %v1045 = vpack.c.b16 %v1032, %v1031
    %v1046 = vpack.c.b16 %v1034, %v1033
    %v1047 = vpack.c.b16 %v1036, %v1035
    %v1048 = vpack.c.b16 %v1038, %v1037
    %v1049 = vpack.c.b16 %v1040, %v1039
    %v1050 = vpack.c.b16 %v1042, %v1041
    %1059 = vmatprep.subr.bf16.mxu0 0
    %1060 = vmatpush1.bf16.msra.mxu0 %v1043
    %1061 = vmatprep.subr.bf16.mxu0 0
    %1062 = vmatpush1.bf16.msra.mxu0 %v1044
    %1063 = vmatprep.subr.bf16.mxu0 0
    %1064 = vmatpush1.bf16.msra.mxu0 %v1045
    %1065 = vmatprep.subr.bf16.mxu0 0
    %1066 = vmatpush1.bf16.msra.mxu0 %v1046
    %1067 = vmatprep.subr.bf16.mxu0 0
    %1068 = vmatpush1.bf16.msra.mxu0 %v1047
    %1069 = vmatprep.subr.bf16.mxu0 0
    %1070 = vmatpush1.bf16.msra.mxu0 %v1048
    %1071 = vmatprep.subr.bf16.mxu0 0
    %1072 = vmatpush1.bf16.msra.mxu0 %v1049
    %1073 = vmatprep.subr.bf16.mxu0 0
    %1074 = vmatpush1.bf16.msra.mxu0 %v1050
    %1075 = vmatprep.subr.bf16.mxu0 0
    %1076 = vmatpush1.bf16.msra.mxu0 0
    %1077 = vmatprep.subr.bf16.mxu0 0
    %1078 = vmatpush1.bf16.msra.mxu0 0
    %1079 = vmatprep.subr.bf16.mxu0 0
    %1080 = vmatpush1.bf16.msra.mxu0 0
    %1081 = vmatprep.subr.bf16.mxu0 0
    %1082 = vmatpush1.bf16.msra.mxu0 0
    %1083 = vmatprep.subr.bf16.mxu0 0
    %1084 = vmatpush1.bf16.msra.mxu0 0
    %1085 = vmatprep.subr.bf16.mxu0 0
    %1086 = vmatpush1.bf16.msra.mxu0 0
    %1087 = vmatprep.subr.bf16.mxu0 0
    %1088 = vmatpush1.bf16.msra.mxu0 0
    %1089 = vmatprep.subr.bf16.mxu0 0
    %1090 = vmatpush1.bf16.msra.mxu0 0
    %1091 = vmatprep.mubr.bf16.mxu0 0
    %1092 = vmatmul.mubr.bf16.gmra.mrb[0].mxu0 %v990
    %v1093 = vpop.f32.mrb[0].mxu0
    %v1094 = vadd.f32 0.0, %v1093
    %v1095 = vpop.f32.mrb[0].mxu0
    %v1096 = vpop.f32.mrb[0].mxu0
    %v1097 = vadd.f32 0.0, %v1096
    %v1098 = vpop.f32.mrb[0].mxu0
    %1099 = vdwg.mxu0
    %v1104 = vunpack.c.l.b16 %v991
    %v1105 = vunpack.c.l.b16 %v992
    %v1106 = vunpack.c.l.b16 %v993
    %v1107 = vunpack.c.l.b16 %v994
    %v1108 = vpack.c.b16 %v1105, %v1104
    %v1109 = vpack.c.b16 %v1107, %v1106
    %vm1112 = vcmask 261120
    %v1114 = vsel %vm1112, %v207, 0
    %1116 = vmatprep.subr.bf16.mxu0 0
    %1117 = vmatpush1.bf16.msra.mxu0 %v1108
    %1118 = vmatprep.subr.bf16.mxu0 0
    %1119 = vmatpush1.bf16.msra.mxu0 %v1109
    %1120 = vmatprep.subr.bf16.mxu0 0
    %1121 = vmatpush1.bf16.msra.mxu0 0
    %1122 = vmatprep.subr.bf16.mxu0 0
    %1123 = vmatpush1.bf16.msra.mxu0 0
    %1124 = vmatprep.subr.bf16.mxu0 0
    %1125 = vmatpush1.bf16.msra.mxu0 0
    %1126 = vmatprep.subr.bf16.mxu0 0
    %1127 = vmatpush1.bf16.msra.mxu0 0
    %1128 = vmatprep.subr.bf16.mxu0 0
    %1129 = vmatpush1.bf16.msra.mxu0 0
    %1130 = vmatprep.subr.bf16.mxu0 0
    %1131 = vmatpush1.bf16.msra.mxu0 0
    %1132 = vmatprep.subr.bf16.mxu0 0
    %1133 = vmatpush1.bf16.msra.mxu0 0
    %1134 = vmatprep.subr.bf16.mxu0 0
    %1135 = vmatpush1.bf16.msra.mxu0 0
    %1136 = vmatprep.subr.bf16.mxu0 0
    %1137 = vmatpush1.bf16.msra.mxu0 0
    %1138 = vmatprep.subr.bf16.mxu0 0
    %1139 = vmatpush1.bf16.msra.mxu0 0
    %1140 = vmatprep.subr.bf16.mxu0 0
    %1141 = vmatpush1.bf16.msra.mxu0 0
    %1142 = vmatprep.subr.bf16.mxu0 0
    %1143 = vmatpush1.bf16.msra.mxu0 0
    %1144 = vmatprep.subr.bf16.mxu0 0
    %1145 = vmatpush1.bf16.msra.mxu0 0
    %1146 = vmatprep.subr.bf16.mxu0 0
    %1147 = vmatpush1.bf16.msra.mxu0 0
    %1148 = vmatprep.mubr.bf16.mxu0 0
    %1149 = vmatmul.mubr.bf16.gmra.mrb[0].mxu0 %v1114
    %v1150 = vpop.f32.mrb[0].mxu0
    %v1151 = vadd.f32 %v1094, %v1150
    %v1152 = vpop.f32.mrb[0].mxu0
    %v1153 = vpop.f32.mrb[0].mxu0
    %v1154 = vadd.f32 %v1097, %v1153
    %v1155 = vpop.f32.mrb[0].mxu0
    %1156 = vdwg.mxu0
    %v1157 = vld [vmem:[#allocation10] sm:$0x1]
    %v1159 = vlaneseq
    %v1160 = vshrl.u32 %v1159, 7
    %v1161 = vsub.s32 0, %v1160
    %v1162 = vrot.slane %v1157, %v1161
    %v1164 = vadd.f32 %v1151, %v1162
    %v1165 = vadd.f32 %v1154, %v1162
    %v1166 = vmax.f32 %v1164, 0.0
    %v1167 = vmax.f32 %v1165, 0.0
    %v1168 = vpack.c.bf16 %v1167, %v1166
    %v1169 = vld [vmem:[%s12] sm:$0xf]
    %v1170 = vld [vmem:[%s12 + $0x4] sm:$0xf]
    %v1171 = vld [vmem:[%s12 + $0x8] sm:$0xf]
    %v1172 = vld [vmem:[%s12 + $0xc] sm:$0xf]
    %v1173 = vld [vmem:[%s12 + $0x10] sm:$0xf]
    %v1174 = vld [vmem:[%s12 + $0x14] sm:$0xf]
    %v1175 = vld [vmem:[%s12 + $0x18] sm:$0xf]
    %v1176 = vld [vmem:[%s12 + $0x1c] sm:$0xf]
    %v1177 = vld [vmem:[#allocation12] sm:$0x1]
    %v1179 = vlaneseq
    %v1180 = vshrl.u32 %v1179, 7
    %v1181 = vsub.s32 0, %v1180
    %v1182 = vrot.slane %v1177, %v1181
    %v1192 = vunpack.c.l.b16 %v1169
    %v1193 = vunpack.c.l.b16 %v1170
    %v1194 = vunpack.c.l.b16 %v1171
    %v1195 = vunpack.c.l.b16 %v1172
    %v1196 = vunpack.c.l.b16 %v1173
    %v1197 = vunpack.c.l.b16 %v1174
    %v1198 = vunpack.c.l.b16 %v1175
    %v1199 = vunpack.c.l.b16 %v1176
    %v1200 = vpack.c.b16 %v1193, %v1192
    %v1201 = vpack.c.b16 %v1195, %v1194
    %v1202 = vpack.c.b16 %v1197, %v1196
    %v1203 = vpack.c.b16 %v1199, %v1198
    %vm1208 = vcmask 523264
    %v1210 = vsel %vm1208, %v1168, 0
    %1212 = vmatprep.subr.bf16.mxu0 0
    %1213 = vmatpush1.bf16.msra.mxu0 %v1200
    %1214 = vmatprep.subr.bf16.mxu0 0
    %1215 = vmatpush1.bf16.msra.mxu0 %v1201
    %1216 = vmatprep.subr.bf16.mxu0 0
    %1217 = vmatpush1.bf16.msra.mxu0 %v1202
    %1218 = vmatprep.subr.bf16.mxu0 0
    %1219 = vmatpush1.bf16.msra.mxu0 %v1203
    %1220 = vmatprep.subr.bf16.mxu0 0
    %1221 = vmatpush1.bf16.msra.mxu0 0
    %1222 = vmatprep.subr.bf16.mxu0 0
    %1223 = vmatpush1.bf16.msra.mxu0 0
    %1224 = vmatprep.subr.bf16.mxu0 0
    %1225 = vmatpush1.bf16.msra.mxu0 0
    %1226 = vmatprep.subr.bf16.mxu0 0
    %1227 = vmatpush1.bf16.msra.mxu0 0
    %1228 = vmatprep.subr.bf16.mxu0 0
    %1229 = vmatpush1.bf16.msra.mxu0 0
    %1230 = vmatprep.subr.bf16.mxu0 0
    %1231 = vmatpush1.bf16.msra.mxu0 0
    %1232 = vmatprep.subr.bf16.mxu0 0
    %1233 = vmatpush1.bf16.msra.mxu0 0
    %1234 = vmatprep.subr.bf16.mxu0 0
    %1235 = vmatpush1.bf16.msra.mxu0 0
    %1236 = vmatprep.subr.bf16.mxu0 0
    %1237 = vmatpush1.bf16.msra.mxu0 0
    %1238 = vmatprep.subr.bf16.mxu0 0
    %1239 = vmatpush1.bf16.msra.mxu0 0
    %1240 = vmatprep.subr.bf16.mxu0 0
    %1241 = vmatpush1.bf16.msra.mxu0 0
    %1242 = vmatprep.subr.bf16.mxu0 0
    %1243 = vmatpush1.bf16.msra.mxu0 0
    %1244 = vmatprep.mubr.bf16.mxu0 0
    %1245 = vmatmul.mubr.bf16.gmra.mrb[0].mxu0 %v1210
    %v1246 = vpop.f32.mrb[0].mxu0
    %v1247 = vadd.f32 %v1182, %v1246
    %v1248 = vpop.f32.mrb[0].mxu0
    %v1249 = vpop.f32.mrb[0].mxu0
    %v1250 = vadd.f32 %v1182, %v1249
    %v1251 = vpop.f32.mrb[0].mxu0
    %1252 = vdwg.mxu0
    %v1253 = vxor.u32 %v1247, 2147483648
    %v1254 = vxor.u32 %v1250, 2147483648
    %v1255 = vmul.f32 %v1253, 1.442695
    %v1256 = vpow.pop %v1255
    %v1257 = vmul.f32 %v1254, 1.442695
    %v1258 = vpow.pop %v1257
    %v1259 = vadd.f32 %v1256, 1.0
    %v1260 = vadd.f32 %v1258, 1.0
    %v1261 = vrcp.pop %v1259
    %v1262 = vmul.f32 1.0, %v1261
    %v1263 = vrcp.pop %v1260
    %v1264 = vmul.f32 1.0, %v1263
    %1265 = vst [vmem:[%s14] sm:$0xff] %v1262
    %1266 = vst [vmem:[%s14 + $0x8] sm:$0xff] %v1264
    // Predicated region
    $region86: #{prediction_model_forward.1} parent=1 // pred_check
      _
    $region87: #{prediction_model_forward.1} parent=1 // pred_check_branch
      %1268 = sbr.rel (0) target = $region89
    $region88: #{prediction_model_forward.1} parent=1 // pred_region
      _
    $region89: #{prediction_model_forward.1} parent=1 // pred_fallthru
      _
    // Predicated region
    $region90: #{prediction_model_forward.1} parent=1 // pred_check
      _
    $region91: #{prediction_model_forward.1} parent=1 // pred_check_branch
      %1270 = sbr.rel (0) target = $region93
    $region92: #{prediction_model_forward.1} parent=1 // pred_region
      _
    $region93: #{prediction_model_forward.1} parent=1 // pred_fallthru
      _
    %1271 = vsyncpa [#allocation3], 1
    %1272 = vsyncpa [#allocation5], 1
    %1273 = vsyncpa [#allocation8], 1
    %1274 = vsyncpa [#allocation11], 1

</llo_original>
